<compile_context>
chip_gen: v6e
topology: v6e:2x2x1
jax: 0.10.0
libtpu: 0.0.40
codegen_flags: <defaults>
</compile_context>

<pallas_src>
import math
import numpy as np
import jax
import jax.numpy as jnp
from jax import lax
from jax.experimental import pallas as pl
from jax.experimental.pallas import tpu as pltpu


def _round_up(x, m):
    return ((x + m - 1) // m) * m


# ----------------------------------------------------------------------------
# Pallas kernel: one (1, tm, K)bf16 row-tile @ resident (K, Dp)bf16 on the MXU
# (f32 accumulation), plus the matching rows of the VMEM-resident pos+bias.
# ----------------------------------------------------------------------------
def _make_patch_embed_kernel(pos_resident, tm):
    def kernel(p_ref, w_ref, pos_ref, out_ref):
        y = jnp.dot(p_ref[0], w_ref[...],
                    preferred_element_type=jnp.float32)        # MXU, f32 acc
        if pos_resident:
            row0 = pl.multiple_of(pl.program_id(1) * tm, 16)
            pos = pos_ref[pl.ds(row0, tm), :]                  # slice resident pos
        else:
            pos = pos_ref[...]                                 # streamed tile
        out_ref[0] = (y + pos).astype(out_ref.dtype)           # VPU add + store
    return kernel


def _pick_row_tile(N, B):
    """Row tile tm (multiple of 16, <= 512) minimizing padding of N."""
    if N <= 512:
        # Whole image per step; split in two for B == 1 so the v7x megacore
        # has >= 2 parallel steps (only when it costs no padding).
        if B == 1 and N > 32 and N % 32 == 0:
            return N // 2
        return _round_up(N, 16)
    best_pad, best_tm = None, None
    for tm in range(512, 127, -16):    # largest tile first (v5e/v6e could go 1024)
        pad = (-N) % tm
        if best_pad is None or pad < best_pad:
            best_pad, best_tm = pad, tm
        if pad == 0:
            break
    return best_tm


def _patch_embed_matmul(patches, w, posb, tm, out_dtype):
    """patches: (B, n_pad, K) bf16; w: (K, Dp) bf16; posb: (n_pad, Dp) f32."""
    B, n_pad, K = patches.shape
    d_pad = w.shape[1]
    nb = n_pad // tm

    # pos+bias resident in VMEM unless its (double-buffered) footprint is big
    # enough to threaten v7x's 64 MiB VMEM; then stream (tm, Dp) tiles.
    pos_resident = 2 * n_pad * d_pad * 4 <= (20 << 20)
    pos_spec = (pl.BlockSpec((n_pad, d_pad), lambda b, m: (0, 0)) if pos_resident
                else pl.BlockSpec((tm, d_pad), lambda b, m: (m, 0)))

    # Right-sized scoped-VMEM request: actual working set + headroom.
    # (W / pos are grid-invariant but still get 2 buffers by default;
    #  TODO(synk): pipeline_mode=pl.Buffered(1) on the resident specs once
    #  single-buffering is verified on the target toolchain.)
    out_bytes = jnp.dtype(out_dtype).itemsize
    vmem_need = (2 * tm * K * 2                  # patches tile, 2 bufs, bf16
                 + 2 * K * d_pad * 2             # resident W, 2 bufs, bf16
                 + 2 * tm * d_pad * out_bytes    # output tile, 2 bufs
                 + (2 * n_pad * d_pad * 4 if pos_resident else 2 * tm * d_pad * 4))
    vmem_limit = int(max(vmem_need + (8 << 20), 16 << 20))

    return pl.pallas_call(
        _make_patch_embed_kernel(pos_resident, tm),
        out_shape=jax.ShapeDtypeStruct((B, n_pad, d_pad), out_dtype),
        grid=(B, nb),
        in_specs=[
            pl.BlockSpec((1, tm, K), lambda b, m: (b, m, 0)),   # patches row-tile
            pl.BlockSpec((K, d_pad), lambda b, m: (0, 0)),      # W: grid-invariant
            pos_spec,                                           # pos + bias
        ],
        out_specs=pl.BlockSpec((1, tm, d_pad), lambda b, m: (b, m, 0)),
        compiler_params=pltpu.CompilerParams(
            dimension_semantics=("parallel", "parallel"),
            vmem_limit_bytes=vmem_limit),
    )(patches, w, posb)


# ----------------------------------------------------------------------------
# Bicubic interpolation matrices (PyTorch F.interpolate, mode='bicubic',
# align_corners=False, antialias=False; cubic-convolution a = -0.75, border
# indices clamped).  Static shapes -> precomputed in numpy (glue).
# ----------------------------------------------------------------------------
def _cubic(t, a=-0.75):
    t = abs(t)
    if t <= 1.0:
        return (a + 2.0) * t**3 - (a + 3.0) * t**2 + 1.0
    elif t < 2.0:
        return a * t**3 - 5.0 * a * t**2 + 8.0 * a * t - 4.0 * a
    return 0.0


def _bicubic_matrix(in_size, out_size):
    m = np.zeros((out_size, in_size), dtype=np.float32)
    scale = in_size / out_size
    for o in range(out_size):
        src = (o + 0.5) * scale - 0.5
        f = math.floor(src)
        t = src - f
        for k, w in zip(range(-1, 3),
                        (_cubic(1.0 + t), _cubic(t), _cubic(1.0 - t), _cubic(2.0 - t))):
            idx = min(max(f + k, 0), in_size - 1)
            m[o, idx] += w
    return jnp.asarray(m)


# ----------------------------------------------------------------------------
# PatchEmbed module (parameters in a dict, forward via Pallas kernel)
# ----------------------------------------------------------------------------
def init_patch_embed(key, img_size=(32, 32), patch_size=(16, 16),
                     in_chans=4, embed_dim=32):
    gh, gw = img_size[0] // patch_size[0], img_size[1] // patch_size[1]
    num_patches = gh * gw
    k1, k2, k3 = jax.random.split(key, 3)
    params = {
        # Conv2d weight, OIHW like PyTorch
        "proj_w": jax.random.normal(k1, (embed_dim, in_chans,
                                         patch_size[0], patch_size[1]),
                                    jnp.float32) * 0.02,
        "proj_b": jax.random.normal(k2, (embed_dim,), jnp.float32) * 0.02,
        # nn.Embedding(num_patches, embed_dim)
        "pos_embed": jax.random.normal(k3, (num_patches, embed_dim),
                                       jnp.float32) * 0.02,
    }
    cfg = dict(img_size=img_size, patch_size=patch_size,
               in_chans=in_chans, embed_dim=embed_dim)
    return params, cfg


def patch_embed_forward(params, cfg, x, out_dtype=jnp.float32):
    """x: (B, C, H, W) float32.  Returns (out (B, N, D), H//16, W//16).

    out_dtype=jnp.bfloat16 is the documented fast path (halves output
    writeback on this HBM-bound op) when downstream accepts bf16.
    """
    B, C, H, W = x.shape
    ph, pw = cfg["patch_size"]
    D = cfg["embed_dim"]
    # The original module's pos-embed resize / return values hardcode //16;
    # its forward only works for patch_size == (16, 16).  Assert loudly.
    assert ph == 16 and pw == 16, "PatchEmbed assumes patch_size == (16, 16)"
    Hp, Wp = H // ph, W // pw
    N = Hp * Wp
    K = C * ph * pw

    # --- glue: im2col emitted directly in bf16, (c, kh, kw)-major K flatten --
    # TODO(synk): fuse patch extraction into the kernel (deliver (1, C, th, ph, W)
    # x-blocks and do the (C,ph)<->Wp reorder on-chip) so x is read from HBM
    # exactly once; the reorder needs lane-splitting relayouts that Mosaic does
    # not lower reliably today, so it stays in XLA for now.
    patches = (x.astype(jnp.bfloat16)
               .reshape(B, C, Hp, ph, Wp, pw)
               .transpose(0, 2, 4, 1, 3, 5)
               .reshape(B, N, K))

    # --- tiling: 2-D grid (B, row-tiles); tm picked to (usually) divide N ----
    tm = _pick_row_tile(N, B)
    n_pad = _round_up(N, tm)
    d_pad = _round_up(D, 128)      # lane-dense output (no-op for D % 128 == 0)
    if n_pad != N:
        patches = jnp.pad(patches, ((0, 0), (0, n_pad - N), (0, 0)))

    # --- glue: conv weight -> (K, Dp) bf16 -----------------------------------
    w = params["proj_w"].reshape(D, K).T
    if d_pad != D:
        w = jnp.pad(w, ((0, 0), (0, d_pad - D)))
    w = w.astype(jnp.bfloat16)

    # --- glue: bicubic-resize pos_embed to (Hp, Wp), fold in the conv bias ---
    gh = cfg["img_size"][0] // 16
    gw = cfg["img_size"][1] // 16
    pos_grid = params["pos_embed"].reshape(gh, gw, D)
    Wh = _bicubic_matrix(gh, Hp)
    Ww = _bicubic_matrix(gw, Wp)
    pos = jnp.einsum("oh,hwd->owd", Wh, pos_grid)
    pos = jnp.einsum("pw,owd->opd", Ww, pos).reshape(N, D)
    posb = pos + params["proj_b"].reshape(1, D)          # bias folded in (f32)
    if d_pad != D:
        posb = jnp.pad(posb, ((0, 0), (0, d_pad - D)))
    if n_pad != N:
        posb = jnp.pad(posb, ((0, n_pad - N), (0, 0)))

    # --- hot path in Pallas: matmul + (pos + bias) add ------------------------
    out = _patch_embed_matmul(patches, w, posb, tm, out_dtype)
    if n_pad != N or d_pad != D:
        out = out[:, :N, :D]
    return out, Hp, Wp


# ----------------------------------------------------------------------------
# References for correctness checks
# ----------------------------------------------------------------------------
def _pos_plus_bias(params, cfg, Hp, Wp):
    D = cfg["embed_dim"]
    gh = cfg["img_size"][0] // 16
    gw = cfg["img_size"][1] // 16
    pos_grid = params["pos_embed"].reshape(gh, gw, D)
    Wh = _bicubic_matrix(gh, Hp)
    Ww = _bicubic_matrix(gw, Wp)
    pos = jnp.einsum("oh,hwd->owd", Wh, pos_grid)
    pos = jnp.einsum("pw,owd->opd", Ww, pos).reshape(1, Hp * Wp, D)
    return pos + params["proj_b"].reshape(1, 1, D)


def _reference_forward_f32(params, cfg, x):
    """PyTorch-exact path: f32 Conv2d + bias + bicubic-resized pos embed."""
    B, C, H, W = x.shape
    ph, pw = cfg["patch_size"]
    D = cfg["embed_dim"]
    y = lax.conv_general_dilated(
        x, params["proj_w"], window_strides=(ph, pw), padding="VALID",
        dimension_numbers=("NCHW", "OIHW", "NCHW"))
    y = y.reshape(B, D, -1).transpose(0, 2, 1)                   # (B, N, D)
    return y + _pos_plus_bias(params, cfg, H // ph, W // pw)


def _reference_forward_bf16(params, cfg, x):
    """Matches the kernel's numerics: bf16 operands, f32 accumulation."""
    B, C, H, W = x.shape
    ph, pw = cfg["patch_size"]
    D = cfg["embed_dim"]
    Hp, Wp = H // ph, W // pw
    N, K = Hp * Wp, C * ph * pw
    p = (x.astype(jnp.bfloat16).reshape(B, C, Hp, ph, Wp, pw)
         .transpose(0, 2, 4, 1, 3, 5).reshape(B, N, K))
    w = params["proj_w"].reshape(D, K).T.astype(jnp.bfloat16)
    y = jnp.einsum("bnk,kd->bnd", p, w, preferred_element_type=jnp.float32)
    return y + _pos_plus_bias(params, cfg, Hp, Wp)


if __name__ == "__main__":
    key = jax.random.PRNGKey(0)
    kp, kx = jax.random.split(key)

    # Small synthetic config: pretrain grid 2x2, input 64x64 -> 4x4 patch grid
    params, cfg = init_patch_embed(kp, img_size=(32, 32), patch_size=(16, 16),
                                   in_chans=4, embed_dim=32)
    x = jax.random.normal(kx, (2, 4, 64, 64), jnp.float32)

    out, hp, wp = patch_embed_forward(params, cfg, x)
    out = jax.block_until_ready(out)

    assert out.shape == (2, hp * wp, 32), out.shape
    assert out.dtype == jnp.float32
    assert hp == 4 and wp == 4

    # Tight check: kernel machinery vs a plain-JAX path with identical
    # bf16-operand / f32-accumulate numerics.
    ref_bf16 = _reference_forward_bf16(params, cfg, x)
    assert jnp.allclose(out, ref_bf16, atol=1e-3, rtol=1e-3), \
        "mismatch vs bf16-matched reference"

    # Loose check: semantics (im2col / OIHW mapping, bias, pos resize) vs the
    # exact f32 Conv2d reference; slack covers the bf16 input quantization.
    ref_f32 = _reference_forward_f32(params, cfg, x)
    assert jnp.allclose(out, ref_f32, atol=5e-2, rtol=5e-2), \
        "mismatch vs f32 conv reference"

    # Fast path: bf16 output (halves output writeback on this HBM-bound op).
    out_bf16, _, _ = patch_embed_forward(params, cfg, x, out_dtype=jnp.bfloat16)
    out_bf16 = jax.block_until_ready(out_bf16)
    assert out_bf16.dtype == jnp.bfloat16
    assert jnp.allclose(out_bf16.astype(jnp.float32), out, atol=2e-2, rtol=2e-2), \
        "mismatch between bf16 and f32 output paths"

    print("KERNEL_OK")
</pallas_src>

<mosaic_0001>
module attributes {stable_mosaic.version = 11 : i64} {
  func.func @kernel(%arg0: i32, %arg1: i32, %arg2: memref<1x16x1024xbf16, #tpu.memory_space<vmem>>, %arg3: memref<1024x128xbf16, #tpu.memory_space<vmem>>, %arg4: memref<16x128xf32, #tpu.memory_space<vmem>>, %arg5: memref<1x16x128xf32, #tpu.memory_space<vmem>>) attributes {dimension_semantics = [#tpu.dimension_semantics<parallel>, #tpu.dimension_semantics<parallel>], iteration_bounds = array<i64: 2, 1>, scalar_prefetch = 0 : i64, scratch_operands = 0 : i64, tpu.core_type = #tpu.core_type<tc>, window_params = [{transform_indices = @transform_0, window_bounds = array<i64: 1, 16, 1024>}, {pipeline_mode = #tpu.pipeline_mode<synchronous>, transform_indices = @transform_1, window_bounds = array<i64: 1024, 128>}, {pipeline_mode = #tpu.pipeline_mode<synchronous>, transform_indices = @transform_2, window_bounds = array<i64: 16, 128>}, {transform_indices = @transform_3, window_bounds = array<i64: 1, 16, 128>}]} {
    %c0 = arith.constant 0 : index
    %c0_0 = arith.constant 0 : index
    %c0_1 = arith.constant 0 : index
    %0 = vector.load %arg2[%c0, %c0_0, %c0_1] : memref<1x16x1024xbf16, #tpu.memory_space<vmem>>, vector<1x16x1024xbf16>
    %1 = vector.shape_cast %0 : vector<1x16x1024xbf16> to vector<16x1024xbf16>
    %c0_2 = arith.constant 0 : index
    %c0_3 = arith.constant 0 : index
    %2 = vector.load %arg3[%c0_2, %c0_3] : memref<1024x128xbf16, #tpu.memory_space<vmem>>, vector<1024x128xbf16>
    %cst = arith.constant dense<0.000000e+00> : vector<16x128xf32>
    %3 = tpu.matmul %1, %2, %cst {dimension_numbers = #tpu.dot_dimension_numbers<[1], [0], [0], [1], [0, 0, 1, 1], [], []>} : vector<16x1024xbf16>, vector<1024x128xbf16>, vector<16x128xf32> -> vector<16x128xf32>
    %c16_i32 = arith.constant 16 : i32
    %4 = arith.muli %arg1, %c16_i32 : i32
    %5 = tpu.assume_multiple %4, 16 : i32
    %6 = arith.index_cast %5 : i32 to index
    %c0_4 = arith.constant 0 : index
    %7 = vector.load %arg4[%6, %c0_4] : memref<16x128xf32, #tpu.memory_space<vmem>>, vector<16x128xf32>
    %8 = arith.addf %3, %7 : vector<16x128xf32>
    %c0_5 = arith.constant 0 : index
    %c0_6 = arith.constant 0 : index
    %c0_7 = arith.constant 0 : index
    %9 = vector.load %arg5[%c0_5, %c0_6, %c0_7] : memref<1x16x128xf32, #tpu.memory_space<vmem>>, vector<1x16x128xf32>
    %10 = vector.shape_cast %9 : vector<1x16x128xf32> to vector<16x128xf32>
    %11 = vector.shape_cast %8 : vector<16x128xf32> to vector<1x16x128xf32>
    tpu.vector_store %arg5[%c0_5, %c0_6, %c0_7], %11 {strides = array<i32>} : memref<1x16x128xf32, #tpu.memory_space<vmem>>, vector<1x16x128xf32>,
    return
  }
  func.func @transform_0(%arg0: i32, %arg1: i32) -> (i32, i32, i32) {
    %c0_i32 = arith.constant 0 : i32
    %c0_i32_0 = arith.constant 0 : i32
    return %arg0, %arg1, %c0_i32 : i32, i32, i32
  }
  func.func @transform_1(%arg0: i32, %arg1: i32) -> (i32, i32) {
    %c0_i32 = arith.constant 0 : i32
    %c0_i32_0 = arith.constant 0 : i32
    %c0_i32_1 = arith.constant 0 : i32
    return %c0_i32, %c0_i32_0 : i32, i32
  }
  func.func @transform_2(%arg0: i32, %arg1: i32) -> (i32, i32) {
    %c0_i32 = arith.constant 0 : i32
    %c0_i32_0 = arith.constant 0 : i32
    %c0_i32_1 = arith.constant 0 : i32
    return %c0_i32, %c0_i32_0 : i32, i32
  }
  func.func @transform_3(%arg0: i32, %arg1: i32) -> (i32, i32, i32) {
    %c0_i32 = arith.constant 0 : i32
    %c0_i32_0 = arith.constant 0 : i32
    return %arg0, %arg1, %c0_i32 : i32, i32, i32
  }
}

</mosaic_0001>

<llo_original>
// kernel: tpu_custom_call.1
$region0: #{tpu_custom_call.1}
  #allocation0 [shape = 'u32[]', space=smem, size = 0x4, offset = 0x4, fixed_abs, tag = 'smem constant byte address 0x4 - core index']
  #allocation1 [shape = 'u32[144,128]{1,0:T(1,128)}', space=vmem, size = 0x12000, scoped, tag = 'internal scratch']
  %s0 = inlined_call_operand.hbm [shape: bf16[2,16,1024], index: 0, kind: input, shape index: {}]
  %s1 = inlined_call_operand.hbm [shape: bf16[1024,128], index: 1, kind: input, shape index: {}]
  %s2 = inlined_call_operand.hbm [shape: f32[16,128], index: 2, kind: input, shape index: {}]
  %s3 = inlined_call_operand.hbm [shape: f32[2,16,128], index: 3, kind: output, shape index: {}]
  %s4 = sld [smem:[#allocation0]]
  $region57: #{tpu_custom_call.1} parent=0
    _
  %s6 = ssub.s32 1, %s4
  %s7 = scalar_select 0, %s6, %s4
  $region1: #{tpu_custom_call.1} parent=0
    #allocation2 [shape = 'u8[65536]{0}', space=vmem, size = 0x10000, scoped, tag = 'input window, operand 0']
    #allocation3 [shape = 's32[2]{0}', space=sflag, size = 0x8, scoped, tag = 'scoped memory for tpu_custom_call.1']
    #allocation4 [shape = 's32[2]{0}', space=sflag, size = 0x8, scoped, tag = 'scoped memory for tpu_custom_call.1']
    #allocation5 [shape = 'u8[262144]{0}', space=vmem, size = 0x40000, scoped, tag = 'input window, operand 1, single buffered']
    #allocation6 [shape = 's32[1]{0}', space=sflag, size = 0x4, scoped, tag = 'scoped memory for tpu_custom_call.1']
    #allocation7 [shape = 'u8[8192]{0}', space=vmem, size = 0x2000, scoped, tag = 'input window, operand 2, single buffered']
    #allocation8 [shape = 'u8[16384]{0}', space=vmem, size = 0x4000, scoped, tag = 'output window, operand 0']
    %8 = vsyncpa [#allocation3], 0
    %s9 = scalar_lea.sflag [#allocation3], 1
    %10 = vsyncpa %s9, 0
    %11 = vsyncpa [#allocation6], 0
    %12 = vsyncpa [#allocation4], 0
    %s13 = scalar_lea.sflag [#allocation4], 1
    %14 = vsyncpa %s13, 0
    loop: start=0, step=1, limit=4
    $region2: #{tpu_custom_call.1} parent=1 // loop_pre_header
      _
    $region3: #{tpu_custom_call.1} parent=1 // loop_header
      %s16 = sphi 0, %s20
      %p17 = scmp.ge.s32.totalorder %s16, 4
      %s23 = sphi 0, %s35
      %s24 = sphi 0, %s31
      %s25 = sphi 0, %s23
      %s26 = sphi 0, %s24
      %s27 = sphi 0, %s25
      %s28 = sphi 0, %s26
      %s40 = sphi 0, %s42
      %s43 = sphi 0, %s40
      %s44 = sphi 0, %s43
      %s60 = sphi 0, %s44
      %s64 = sphi 0, %s64
      %s66 = sphi 0, %s64
      %s67 = sphi 0, %s66
      %s81 = sphi 0, %s67
      %s85 = sphi 0, %s85
      %s87 = sphi 0, %s85
      %s88 = sphi 0, %s87
      %s102 = sphi 0, %s88
      %s110 = sphi 0, %s112
      %s113 = sphi 0, %s110
      %s114 = sphi 0, %s113
      %s130 = sphi 0, %s114
    $region4: #{tpu_custom_call.1} parent=1 // loop_header_branch
      %19 = sbr.rel (%p17) target = $region8
    $region5: #{tpu_custom_call.1} parent=1 // loop_body
      %s21 = ssub.s32 %s16, 1
      %s22 = ssub.s32 %s16, 2
      %s29 = sadd.s32 1, %s24
      %p30 = scmp.ge.s32.totalorder %s29, 1
      %s31 = scalar_select %p30, 0, %s29
      %s32 = sadd.s32 1, %s23
      %s33 = scalar_select %p30, %s32, %s23
      %p34 = scmp.ge.s32.totalorder %s33, 2
      %s35 = scalar_select %p34, 0, %s33
      %s36 = ssub.s32 %s23, %s35
      %s37 = ssub.s32 %s24, %s31
      %s38 = sor.u32 %s36, %s37
      %p39 = scmp.eq.s32.totalorder %s38, 0
      %s41 = sadd.s32 %s40, 1
      %s42 = scalar_select %p39, %s40, %s41
      %p45 = pneg %p39
      %p46 = scmp.eq.s32.totalorder %s16, 1
      %p47 = por %p45, %p46
      %p48 = scmp.ne.s32.totalorder %s40, %s43
      %p49 = scmp.eq.s32.totalorder %s16, 0
      %p50 = por %p48, %p49
      %p51 = scmp.ne.s32.totalorder %s40, %s43
      %p52 = scmp.eq.s32.totalorder %s21, 1
      %p53 = por %p51, %p52
      %p54 = scmp.ne.s32.totalorder %s43, %s44
      %p55 = scmp.eq.s32.totalorder %s21, 0
      %p56 = por %p54, %p55
      %p57 = scmp.ne.s32.totalorder %s43, %s44
      %p58 = scmp.eq.s32.totalorder %s22, 1
      %p59 = por %p57, %p58
      %p61 = scmp.ne.s32.totalorder %s44, %s60
      %p62 = scmp.eq.s32.totalorder %s22, 0
      %p63 = por %p61, %p62
      %s65 = sadd.s32 %s64, 1
      %p68 = scmp.eq.s32.totalorder %s16, 1
      %p69 = scmp.ne.s32.totalorder %s64, %s66
      %p70 = scmp.eq.s32.totalorder %s16, 0
      %p71 = por %p69, %p70
      %p72 = scmp.ne.s32.totalorder %s64, %s66
      %p73 = scmp.eq.s32.totalorder %s21, 1
      %p74 = por %p72, %p73
      %p75 = scmp.ne.s32.totalorder %s66, %s67
      %p76 = scmp.eq.s32.totalorder %s21, 0
      %p77 = por %p75, %p76
      %p78 = scmp.ne.s32.totalorder %s66, %s67
      %p79 = scmp.eq.s32.totalorder %s22, 1
      %p80 = por %p78, %p79
      %p82 = scmp.ne.s32.totalorder %s67, %s81
      %p83 = scmp.eq.s32.totalorder %s22, 0
      %p84 = por %p82, %p83
      %s86 = sadd.s32 %s85, 1
      %p89 = scmp.eq.s32.totalorder %s16, 1
      %p90 = scmp.ne.s32.totalorder %s85, %s87
      %p91 = scmp.eq.s32.totalorder %s16, 0
      %p92 = por %p90, %p91
      %p93 = scmp.ne.s32.totalorder %s85, %s87
      %p94 = scmp.eq.s32.totalorder %s21, 1
      %p95 = por %p93, %p94
      %p96 = scmp.ne.s32.totalorder %s87, %s88
      %p97 = scmp.eq.s32.totalorder %s21, 0
      %p98 = por %p96, %p97
      %p99 = scmp.ne.s32.totalorder %s87, %s88
      %p100 = scmp.eq.s32.totalorder %s22, 1
      %p101 = por %p99, %p100
      %p103 = scmp.ne.s32.totalorder %s88, %s102
      %p104 = scmp.eq.s32.totalorder %s22, 0
      %p105 = por %p103, %p104
      %s106 = ssub.s32 %s23, %s35
      %s107 = ssub.s32 %s24, %s31
      %s108 = sor.u32 %s106, %s107
      %p109 = scmp.eq.s32.totalorder %s108, 0
      %s111 = sadd.s32 %s110, 1
      %s112 = scalar_select %p109, %s110, %s111
      %p115 = pneg %p109
      %p116 = scmp.eq.s32.totalorder %s16, 1
      %p117 = por %p115, %p116
      %p118 = scmp.ne.s32.totalorder %s110, %s113
      %p119 = scmp.eq.s32.totalorder %s16, 0
      %p120 = por %p118, %p119
      %p121 = scmp.ne.s32.totalorder %s110, %s113
      %p122 = scmp.eq.s32.totalorder %s21, 1
      %p123 = por %p121, %p122
      %p124 = scmp.ne.s32.totalorder %s113, %s114
      %p125 = scmp.eq.s32.totalorder %s21, 0
      %p126 = por %p124, %p125
      %p127 = scmp.ne.s32.totalorder %s113, %s114
      %p128 = scmp.eq.s32.totalorder %s22, 1
      %p129 = por %p127, %p128
      %p131 = scmp.ne.s32.totalorder %s114, %s130
      %p132 = scmp.eq.s32.totalorder %s22, 0
      %p133 = por %p131, %p132
      %p134 = scmp.le.s32.totalorder 1, %s16
      %p135 = scmp.lt.s32.totalorder %s16, 3
      %p136 = pnand %p134, %p135
      %p137 = pneg %p136
      // Predicated region
      $region9: #{tpu_custom_call.1} parent=5 // pred_check
        _
      $region10: #{tpu_custom_call.1} parent=5 // pred_check_branch
        %139 = sbr.rel (%p136) target = $region12
      $region11: #{tpu_custom_call.1} parent=5 // pred_region
        %s140 = ssub.s32 %s16, 1
        // Predicated region
        $region13: #{tpu_custom_call.1} parent=11 // pred_check
          %p141 = pneg %p77
        $region14: #{tpu_custom_call.1} parent=11 // pred_check_branch
          %143 = sbr.rel (%p141) target = $region16
        $region15: #{tpu_custom_call.1} parent=11 // pred_region
          %s145 = ssub.s32 8192, 8192
          %146 = vsyncadd [#allocation6], %s145
          %s147 = sshll.u32 [#allocation5], 4
          %s148 = int_to_ptr.vmem [resolvable:$true] %s147
          %153 = dma.hbm_to_vmem [thread:$0]  %s1, 8192, %s148, [#allocation6], 64, 64, 4
        $region16: #{tpu_custom_call.1} parent=11 // pred_fallthru
          _
        // Predicated region
        $region17: #{tpu_custom_call.1} parent=11 // pred_check
          %p154 = pneg %p98
        $region18: #{tpu_custom_call.1} parent=11 // pred_check_branch
          %156 = sbr.rel (%p154) target = $region20
        $region19: #{tpu_custom_call.1} parent=11 // pred_region
          %s158 = ssub.s32 256, 256
          %159 = vsyncadd [#allocation6], %s158
          %s160 = sshll.u32 [#allocation7], 4
          %s161 = int_to_ptr.vmem [resolvable:$true] %s160
          %166 = dma.hbm_to_vmem [thread:$0]  %s2, 256, %s161, [#allocation6], 128, 128, 8
        $region20: #{tpu_custom_call.1} parent=11 // pred_fallthru
          _
      $region12: #{tpu_custom_call.1} parent=5 // pred_fallthru
        _
      %p167 = scmp.lt.s32.totalorder %s16, 2
      // Predicated region
      $region21: #{tpu_custom_call.1} parent=5 // pred_check
        %p168 = pneg %p167
      $region22: #{tpu_custom_call.1} parent=5 // pred_check_branch
        %170 = sbr.rel (%p168) target = $region24
      $region23: #{tpu_custom_call.1} parent=5 // pred_region
        // Predicated region
        $region25: #{tpu_custom_call.1} parent=23 // pred_check
          %p171 = pneg %p50
        $region26: #{tpu_custom_call.1} parent=23 // pred_check_branch
          %173 = sbr.rel (%p171) target = $region28
        $region27: #{tpu_custom_call.1} parent=23 // pred_region
          %s174 = sand.u32 %s40, 1
          %s175 = scalar_lea.sflag [#allocation3], %s174
          %s176 = sand.u32 %s40, 1
          %s177 = smul.addr %s176, 64
          %s178 = scalar_lea.vmem [#allocation2], %s177
          %s179 = smul.u32 2, %s24
          %s181 = ssub.s32 1024, 1024
          %182 = vsyncadd %s175, %s181
          %s183 = smul.addr %s179, 8
          %s184 = smul.addr %s23, 16
          %s185 = sadd.s32 %s183, %s184
          %s186 = smul.addr %s185, 64
          %s187 = scalar_lea.hbm %s0, %s186
          %s188 = sshll.u32 %s178, 4
          %s189 = int_to_ptr.vmem [resolvable:$true] %s188
          %194 = dma.hbm_to_vmem [thread:$0]  %s187, 1024, %s189, %s175, 512, 512, 32
        $region28: #{tpu_custom_call.1} parent=23 // pred_fallthru
          _
      $region24: #{tpu_custom_call.1} parent=5 // pred_fallthru
        _
      %p195 = scmp.le.s32.totalorder 1, %s16
      %p196 = scmp.lt.s32.totalorder %s16, 3
      %p197 = pnand %p195, %p196
      %p198 = pneg %p197
      // Predicated region
      $region29: #{tpu_custom_call.1} parent=5 // pred_check
        _
      $region30: #{tpu_custom_call.1} parent=5 // pred_check_branch
        %200 = sbr.rel (%p197) target = $region32
      $region31: #{tpu_custom_call.1} parent=5 // pred_region
        %s201 = ssub.s32 %s16, 1
        %s202 = sand.u32 %s43, 1
        %s203 = scalar_lea.sflag [#allocation3], %s202
        %s204 = sand.u32 %s43, 1
        %s205 = smul.addr %s204, 64
        %s206 = scalar_lea.vmem [#allocation2], %s205
        // Predicated region
        $region33: #{tpu_custom_call.1} parent=31 // pred_check
          %p207 = pneg %p56
        $region34: #{tpu_custom_call.1} parent=31 // pred_check_branch
          %209 = sbr.rel (%p207) target = $region36
        $region35: #{tpu_custom_call.1} parent=31 // pred_region
          %210 = dma.done %s203, 1024
        $region36: #{tpu_custom_call.1} parent=31 // pred_fallthru
          _
        // Predicated region
        $region37: #{tpu_custom_call.1} parent=31 // pred_check
          %p211 = pneg %p77
        $region38: #{tpu_custom_call.1} parent=31 // pred_check_branch
          %213 = sbr.rel (%p211) target = $region40
        $region39: #{tpu_custom_call.1} parent=31 // pred_region
          %214 = dma.done [#allocation6], 8192
        $region40: #{tpu_custom_call.1} parent=31 // pred_fallthru
          _
        // Predicated region
        $region41: #{tpu_custom_call.1} parent=31 // pred_check
          %p215 = pneg %p98
        $region42: #{tpu_custom_call.1} parent=31 // pred_check_branch
          %217 = sbr.rel (%p215) target = $region44
        $region43: #{tpu_custom_call.1} parent=31 // pred_region
          %218 = dma.done [#allocation6], 256
        $region44: #{tpu_custom_call.1} parent=31 // pred_fallthru
          _
        %s219 = sand.u32 %s43, 1
        %s220 = scalar_lea.sflag [#allocation3], %s219
        %s221 = sand.u32 %s43, 1
        %s222 = smul.addr %s221, 64
        %s223 = scalar_lea.vmem [#allocation2], %s222
        %p224 = pneg %p56
        %p225 = pneg %p53
        %p226 = pneg %p77
        %p227 = pneg %p74
        %p228 = pneg %p98
        %p229 = pneg %p95
        %p230 = pneg %p126
        %p231 = pneg %p123
        %s232 = sand.u32 %s113, 1
        %s233 = scalar_lea.sflag [#allocation4], %s232
        %s234 = sand.u32 %s113, 1
        %s235 = smul.addr %s234, 16
        %s236 = scalar_lea.vmem [#allocation8], %s235
        %s237 = smul.u32 2, %s26
        %s238 = smul.u32 2, %s26
        %v240 = vld [vmem:[%s206] sm:$0xff]
        %v241 = vld [vmem:[%s206 + $0x8] sm:$0xff]
        %v242 = vld [vmem:[%s206 + $0x10] sm:$0xff]
        %v243 = vld [vmem:[%s206 + $0x18] sm:$0xff]
        %v244 = vld [vmem:[%s206 + $0x20] sm:$0xff]
        %v245 = vld [vmem:[%s206 + $0x28] sm:$0xff]
        %v246 = vld [vmem:[%s206 + $0x30] sm:$0xff]
        %v247 = vld [vmem:[%s206 + $0x38] sm:$0xff]
        %v248 = vld [vmem:[#allocation5] sm:$0xf]
        %v249 = vld [vmem:[#allocation5 + $0x4] sm:$0xf]
        %v250 = vld [vmem:[#allocation5 + $0x8] sm:$0xf]
        %v251 = vld [vmem:[#allocation5 + $0xc] sm:$0xf]
        %v252 = vld [vmem:[#allocation5 + $0x10] sm:$0xf]
        %v253 = vld [vmem:[#allocation5 + $0x14] sm:$0xf]
        %v254 = vld [vmem:[#allocation5 + $0x18] sm:$0xf]
        %v255 = vld [vmem:[#allocation5 + $0x1c] sm:$0xf]
        %v256 = vld [vmem:[#allocation5 + $0x20] sm:$0xf]
        %v257 = vld [vmem:[#allocation5 + $0x24] sm:$0xf]
        %v258 = vld [vmem:[#allocation5 + $0x28] sm:$0xf]
        %v259 = vld [vmem:[#allocation5 + $0x2c] sm:$0xf]
        %v260 = vld [vmem:[#allocation5 + $0x30] sm:$0xf]
        %v261 = vld [vmem:[#allocation5 + $0x34] sm:$0xf]
        %v262 = vld [vmem:[#allocation5 + $0x38] sm:$0xf]
        %v263 = vld [vmem:[#allocation5 + $0x3c] sm:$0xf]
        %v264 = vld [vmem:[#allocation5 + $0x40] sm:$0xf]
        %v265 = vld [vmem:[#allocation5 + $0x44] sm:$0xf]
        %v266 = vld [vmem:[#allocation5 + $0x48] sm:$0xf]
        %v267 = vld [vmem:[#allocation5 + $0x4c] sm:$0xf]
        %v268 = vld [vmem:[#allocation5 + $0x50] sm:$0xf]
        %v269 = vld [vmem:[#allocation5 + $0x54] sm:$0xf]
        %v270 = vld [vmem:[#allocation5 + $0x58] sm:$0xf]
        %v271 = vld [vmem:[#allocation5 + $0x5c] sm:$0xf]
        %v272 = vld [vmem:[#allocation5 + $0x60] sm:$0xf]
        %v273 = vld [vmem:[#allocation5 + $0x64] sm:$0xf]
        %v274 = vld [vmem:[#allocation5 + $0x68] sm:$0xf]
        %v275 = vld [vmem:[#allocation5 + $0x6c] sm:$0xf]
        %v276 = vld [vmem:[#allocation5 + $0x70] sm:$0xf]
        %v277 = vld [vmem:[#allocation5 + $0x74] sm:$0xf]
        %v278 = vld [vmem:[#allocation5 + $0x78] sm:$0xf]
        %v279 = vld [vmem:[#allocation5 + $0x7c] sm:$0xf]
        %v280 = vld [vmem:[#allocation5 + $0x80] sm:$0xf]
        %v281 = vld [vmem:[#allocation5 + $0x84] sm:$0xf]
        %v282 = vld [vmem:[#allocation5 + $0x88] sm:$0xf]
        %v283 = vld [vmem:[#allocation5 + $0x8c] sm:$0xf]
        %v284 = vld [vmem:[#allocation5 + $0x90] sm:$0xf]
        %v285 = vld [vmem:[#allocation5 + $0x94] sm:$0xf]
        %v286 = vld [vmem:[#allocation5 + $0x98] sm:$0xf]
        %v287 = vld [vmem:[#allocation5 + $0x9c] sm:$0xf]
        %v288 = vld [vmem:[#allocation5 + $0xa0] sm:$0xf]
        %v289 = vld [vmem:[#allocation5 + $0xa4] sm:$0xf]
        %v290 = vld [vmem:[#allocation5 + $0xa8] sm:$0xf]
        %v291 = vld [vmem:[#allocation5 + $0xac] sm:$0xf]
        %v292 = vld [vmem:[#allocation5 + $0xb0] sm:$0xf]
        %v293 = vld [vmem:[#allocation5 + $0xb4] sm:$0xf]
        %v294 = vld [vmem:[#allocation5 + $0xb8] sm:$0xf]
        %v295 = vld [vmem:[#allocation5 + $0xbc] sm:$0xf]
        %v296 = vld [vmem:[#allocation5 + $0xc0] sm:$0xf]
        %v297 = vld [vmem:[#allocation5 + $0xc4] sm:$0xf]
        %v298 = vld [vmem:[#allocation5 + $0xc8] sm:$0xf]
        %v299 = vld [vmem:[#allocation5 + $0xcc] sm:$0xf]
        %v300 = vld [vmem:[#allocation5 + $0xd0] sm:$0xf]
        %v301 = vld [vmem:[#allocation5 + $0xd4] sm:$0xf]
        %v302 = vld [vmem:[#allocation5 + $0xd8] sm:$0xf]
        %v303 = vld [vmem:[#allocation5 + $0xdc] sm:$0xf]
        %v304 = vld [vmem:[#allocation5 + $0xe0] sm:$0xf]
        %v305 = vld [vmem:[#allocation5 + $0xe4] sm:$0xf]
        %v306 = vld [vmem:[#allocation5 + $0xe8] sm:$0xf]
        %v307 = vld [vmem:[#allocation5 + $0xec] sm:$0xf]
        %v308 = vld [vmem:[#allocation5 + $0xf0] sm:$0xf]
        %v309 = vld [vmem:[#allocation5 + $0xf4] sm:$0xf]
        %v310 = vld [vmem:[#allocation5 + $0xf8] sm:$0xf]
        %v311 = vld [vmem:[#allocation5 + $0xfc] sm:$0xf]
        %v312 = vld [vmem:[#allocation5 + $0x100] sm:$0xf]
        %v313 = vld [vmem:[#allocation5 + $0x104] sm:$0xf]
        %v314 = vld [vmem:[#allocation5 + $0x108] sm:$0xf]
        %v315 = vld [vmem:[#allocation5 + $0x10c] sm:$0xf]
        %v316 = vld [vmem:[#allocation5 + $0x110] sm:$0xf]
        %v317 = vld [vmem:[#allocation5 + $0x114] sm:$0xf]
        %v318 = vld [vmem:[#allocation5 + $0x118] sm:$0xf]
        %v319 = vld [vmem:[#allocation5 + $0x11c] sm:$0xf]
        %v320 = vld [vmem:[#allocation5 + $0x120] sm:$0xf]
        %v321 = vld [vmem:[#allocation5 + $0x124] sm:$0xf]
        %v322 = vld [vmem:[#allocation5 + $0x128] sm:$0xf]
        %v323 = vld [vmem:[#allocation5 + $0x12c] sm:$0xf]
        %v324 = vld [vmem:[#allocation5 + $0x130] sm:$0xf]
        %v325 = vld [vmem:[#allocation5 + $0x134] sm:$0xf]
        %v326 = vld [vmem:[#allocation5 + $0x138] sm:$0xf]
        %v327 = vld [vmem:[#allocation5 + $0x13c] sm:$0xf]
        %v328 = vld [vmem:[#allocation5 + $0x140] sm:$0xf]
        %v329 = vld [vmem:[#allocation5 + $0x144] sm:$0xf]
        %v330 = vld [vmem:[#allocation5 + $0x148] sm:$0xf]
        %v331 = vld [vmem:[#allocation5 + $0x14c] sm:$0xf]
        %v332 = vld [vmem:[#allocation5 + $0x150] sm:$0xf]
        %v333 = vld [vmem:[#allocation5 + $0x154] sm:$0xf]
        %v334 = vld [vmem:[#allocation5 + $0x158] sm:$0xf]
        %v335 = vld [vmem:[#allocation5 + $0x15c] sm:$0xf]
        %v336 = vld [vmem:[#allocation5 + $0x160] sm:$0xf]
        %v337 = vld [vmem:[#allocation5 + $0x164] sm:$0xf]
        %v338 = vld [vmem:[#allocation5 + $0x168] sm:$0xf]
        %v339 = vld [vmem:[#allocation5 + $0x16c] sm:$0xf]
        %v340 = vld [vmem:[#allocation5 + $0x170] sm:$0xf]
        %v341 = vld [vmem:[#allocation5 + $0x174] sm:$0xf]
        %v342 = vld [vmem:[#allocation5 + $0x178] sm:$0xf]
        %v343 = vld [vmem:[#allocation5 + $0x17c] sm:$0xf]
        %v344 = vld [vmem:[#allocation5 + $0x180] sm:$0xf]
        %v345 = vld [vmem:[#allocation5 + $0x184] sm:$0xf]
        %v346 = vld [vmem:[#allocation5 + $0x188] sm:$0xf]
        %v347 = vld [vmem:[#allocation5 + $0x18c] sm:$0xf]
        %v348 = vld [vmem:[#allocation5 + $0x190] sm:$0xf]
        %v349 = vld [vmem:[#allocation5 + $0x194] sm:$0xf]
        %v350 = vld [vmem:[#allocation5 + $0x198] sm:$0xf]
        %v351 = vld [vmem:[#allocation5 + $0x19c] sm:$0xf]
        %v352 = vld [vmem:[#allocation5 + $0x1a0] sm:$0xf]
        %v353 = vld [vmem:[#allocation5 + $0x1a4] sm:$0xf]
        %v354 = vld [vmem:[#allocation5 + $0x1a8] sm:$0xf]
        %v355 = vld [vmem:[#allocation5 + $0x1ac] sm:$0xf]
        %v356 = vld [vmem:[#allocation5 + $0x1b0] sm:$0xf]
        %v357 = vld [vmem:[#allocation5 + $0x1b4] sm:$0xf]
        %v358 = vld [vmem:[#allocation5 + $0x1b8] sm:$0xf]
        %v359 = vld [vmem:[#allocation5 + $0x1bc] sm:$0xf]
        %v360 = vld [vmem:[#allocation5 + $0x1c0] sm:$0xf]
        %v361 = vld [vmem:[#allocation5 + $0x1c4] sm:$0xf]
        %v362 = vld [vmem:[#allocation5 + $0x1c8] sm:$0xf]
        %v363 = vld [vmem:[#allocation5 + $0x1cc] sm:$0xf]
        %v364 = vld [vmem:[#allocation5 + $0x1d0] sm:$0xf]
        %v365 = vld [vmem:[#allocation5 + $0x1d4] sm:$0xf]
        %v366 = vld [vmem:[#allocation5 + $0x1d8] sm:$0xf]
        %v367 = vld [vmem:[#allocation5 + $0x1dc] sm:$0xf]
        %v368 = vld [vmem:[#allocation5 + $0x1e0] sm:$0xf]
        %v369 = vld [vmem:[#allocation5 + $0x1e4] sm:$0xf]
        %v370 = vld [vmem:[#allocation5 + $0x1e8] sm:$0xf]
        %v371 = vld [vmem:[#allocation5 + $0x1ec] sm:$0xf]
        %v372 = vld [vmem:[#allocation5 + $0x1f0] sm:$0xf]
        %v373 = vld [vmem:[#allocation5 + $0x1f4] sm:$0xf]
        %v374 = vld [vmem:[#allocation5 + $0x1f8] sm:$0xf]
        %v375 = vld [vmem:[#allocation5 + $0x1fc] sm:$0xf]
        %s376 = smul.u32 %s26, 16
        %s377 = scalar_lea.vmem [#allocation7], %s376
        %v378 = vld [vmem:[%s377] sm:$0xff]
        %v379 = vld [vmem:[%s377 + $0x8] sm:$0xff]
        %v388 = vunpack.c.l.b16 %v240
        %v389 = vunpack.c.h.b16 %v240
        %v390 = vunpack.c.l.b16 %v241
        %v391 = vunpack.c.h.b16 %v241
        %v392 = vunpack.c.l.b16 %v242
        %v393 = vunpack.c.h.b16 %v242
        %v394 = vunpack.c.l.b16 %v243
        %v395 = vunpack.c.h.b16 %v243
        %v396 = vunpack.c.l.b16 %v244
        %v397 = vunpack.c.h.b16 %v244
        %v398 = vunpack.c.l.b16 %v245
        %v399 = vunpack.c.h.b16 %v245
        %v400 = vunpack.c.l.b16 %v246
        %v401 = vunpack.c.h.b16 %v246
        %v402 = vunpack.c.l.b16 %v247
        %v403 = vunpack.c.h.b16 %v247
        %v404 = vpack.c.b16 %v396, %v388
        %v405 = vpack.c.b16 %v397, %v389
        %v406 = vpack.c.b16 %v398, %v390
        %v407 = vpack.c.b16 %v399, %v391
        %v408 = vpack.c.b16 %v400, %v392
        %v409 = vpack.c.b16 %v401, %v393
        %v410 = vpack.c.b16 %v402, %v394
        %v411 = vpack.c.b16 %v403, %v395
        %v548 = vunpack.c.l.b16 %v248
        %v549 = vunpack.c.l.b16 %v249
        %v550 = vunpack.c.l.b16 %v250
        %v551 = vunpack.c.l.b16 %v251
        %v552 = vunpack.c.l.b16 %v252
        %v553 = vunpack.c.l.b16 %v253
        %v554 = vunpack.c.l.b16 %v254
        %v555 = vunpack.c.l.b16 %v255
        %v556 = vunpack.c.l.b16 %v256
        %v557 = vunpack.c.l.b16 %v257
        %v558 = vunpack.c.l.b16 %v258
        %v559 = vunpack.c.l.b16 %v259
        %v560 = vunpack.c.l.b16 %v260
        %v561 = vunpack.c.l.b16 %v261
        %v562 = vunpack.c.l.b16 %v262
        %v563 = vunpack.c.l.b16 %v263
        %v564 = vunpack.c.l.b16 %v264
        %v565 = vunpack.c.l.b16 %v265
        %v566 = vunpack.c.l.b16 %v266
        %v567 = vunpack.c.l.b16 %v267
        %v568 = vunpack.c.l.b16 %v268
        %v569 = vunpack.c.l.b16 %v269
        %v570 = vunpack.c.l.b16 %v270
        %v571 = vunpack.c.l.b16 %v271
        %v572 = vunpack.c.l.b16 %v272
        %v573 = vunpack.c.l.b16 %v273
        %v574 = vunpack.c.l.b16 %v274
        %v575 = vunpack.c.l.b16 %v275
        %v576 = vunpack.c.l.b16 %v276
        %v577 = vunpack.c.l.b16 %v277
        %v578 = vunpack.c.l.b16 %v278
        %v579 = vunpack.c.l.b16 %v279
        %v580 = vunpack.c.l.b16 %v280
        %v581 = vunpack.c.l.b16 %v281
        %v582 = vunpack.c.l.b16 %v282
        %v583 = vunpack.c.l.b16 %v283
        %v584 = vunpack.c.l.b16 %v284
        %v585 = vunpack.c.l.b16 %v285
        %v586 = vunpack.c.l.b16 %v286
        %v587 = vunpack.c.l.b16 %v287
        %v588 = vunpack.c.l.b16 %v288
        %v589 = vunpack.c.l.b16 %v289
        %v590 = vunpack.c.l.b16 %v290
        %v591 = vunpack.c.l.b16 %v291
        %v592 = vunpack.c.l.b16 %v292
        %v593 = vunpack.c.l.b16 %v293
        %v594 = vunpack.c.l.b16 %v294
        %v595 = vunpack.c.l.b16 %v295
        %v596 = vunpack.c.l.b16 %v296
        %v597 = vunpack.c.l.b16 %v297
        %v598 = vunpack.c.l.b16 %v298
        %v599 = vunpack.c.l.b16 %v299
        %v600 = vunpack.c.l.b16 %v300
        %v601 = vunpack.c.l.b16 %v301
        %v602 = vunpack.c.l.b16 %v302
        %v603 = vunpack.c.l.b16 %v303
        %v604 = vunpack.c.l.b16 %v304
        %v605 = vunpack.c.l.b16 %v305
        %v606 = vunpack.c.l.b16 %v306
        %v607 = vunpack.c.l.b16 %v307
        %v608 = vunpack.c.l.b16 %v308
        %v609 = vunpack.c.l.b16 %v309
        %v610 = vunpack.c.l.b16 %v310
        %v611 = vunpack.c.l.b16 %v311
        %v612 = vunpack.c.l.b16 %v312
        %v613 = vunpack.c.l.b16 %v313
        %v614 = vunpack.c.l.b16 %v314
        %v615 = vunpack.c.l.b16 %v315
        %v616 = vunpack.c.l.b16 %v316
        %v617 = vunpack.c.l.b16 %v317
        %v618 = vunpack.c.l.b16 %v318
        %v619 = vunpack.c.l.b16 %v319
        %v620 = vunpack.c.l.b16 %v320
        %v621 = vunpack.c.l.b16 %v321
        %v622 = vunpack.c.l.b16 %v322
        %v623 = vunpack.c.l.b16 %v323
        %v624 = vunpack.c.l.b16 %v324
        %v625 = vunpack.c.l.b16 %v325
        %v626 = vunpack.c.l.b16 %v326
        %v627 = vunpack.c.l.b16 %v327
        %v628 = vunpack.c.l.b16 %v328
        %v629 = vunpack.c.l.b16 %v329
        %v630 = vunpack.c.l.b16 %v330
        %v631 = vunpack.c.l.b16 %v331
        %v632 = vunpack.c.l.b16 %v332
        %v633 = vunpack.c.l.b16 %v333
        %v634 = vunpack.c.l.b16 %v334
        %v635 = vunpack.c.l.b16 %v335
        %v636 = vunpack.c.l.b16 %v336
        %v637 = vunpack.c.l.b16 %v337
        %v638 = vunpack.c.l.b16 %v338
        %v639 = vunpack.c.l.b16 %v339
        %v640 = vunpack.c.l.b16 %v340
        %v641 = vunpack.c.l.b16 %v341
        %v642 = vunpack.c.l.b16 %v342
        %v643 = vunpack.c.l.b16 %v343
        %v644 = vunpack.c.l.b16 %v344
        %v645 = vunpack.c.l.b16 %v345
        %v646 = vunpack.c.l.b16 %v346
        %v647 = vunpack.c.l.b16 %v347
        %v648 = vunpack.c.l.b16 %v348
        %v649 = vunpack.c.l.b16 %v349
        %v650 = vunpack.c.l.b16 %v350
        %v651 = vunpack.c.l.b16 %v351
        %v652 = vunpack.c.l.b16 %v352
        %v653 = vunpack.c.l.b16 %v353
        %v654 = vunpack.c.l.b16 %v354
        %v655 = vunpack.c.l.b16 %v355
        %v656 = vunpack.c.l.b16 %v356
        %v657 = vunpack.c.l.b16 %v357
        %v658 = vunpack.c.l.b16 %v358
        %v659 = vunpack.c.l.b16 %v359
        %v660 = vunpack.c.l.b16 %v360
        %v661 = vunpack.c.l.b16 %v361
        %v662 = vunpack.c.l.b16 %v362
        %v663 = vunpack.c.l.b16 %v363
        %v664 = vunpack.c.l.b16 %v364
        %v665 = vunpack.c.l.b16 %v365
        %v666 = vunpack.c.l.b16 %v366
        %v667 = vunpack.c.l.b16 %v367
        %v668 = vunpack.c.l.b16 %v368
        %v669 = vunpack.c.l.b16 %v369
        %v670 = vunpack.c.l.b16 %v370
        %v671 = vunpack.c.l.b16 %v371
        %v672 = vunpack.c.l.b16 %v372
        %v673 = vunpack.c.l.b16 %v373
        %v674 = vunpack.c.l.b16 %v374
        %v675 = vunpack.c.l.b16 %v375
        %v676 = vpack.c.b16 %v549, %v548
        %v677 = vpack.c.b16 %v551, %v550
        %v678 = vpack.c.b16 %v553, %v552
        %v679 = vpack.c.b16 %v555, %v554
        %v680 = vpack.c.b16 %v557, %v556
        %v681 = vpack.c.b16 %v559, %v558
        %v682 = vpack.c.b16 %v561, %v560
        %v683 = vpack.c.b16 %v563, %v562
        %v684 = vpack.c.b16 %v565, %v564
        %v685 = vpack.c.b16 %v567, %v566
        %v686 = vpack.c.b16 %v569, %v568
        %v687 = vpack.c.b16 %v571, %v570
        %v688 = vpack.c.b16 %v573, %v572
        %v689 = vpack.c.b16 %v575, %v574
        %v690 = vpack.c.b16 %v577, %v576
        %v691 = vpack.c.b16 %v579, %v578
        %v692 = vpack.c.b16 %v581, %v580
        %v693 = vpack.c.b16 %v583, %v582
        %v694 = vpack.c.b16 %v585, %v584
        %v695 = vpack.c.b16 %v587, %v586
        %v696 = vpack.c.b16 %v589, %v588
        %v697 = vpack.c.b16 %v591, %v590
        %v698 = vpack.c.b16 %v593, %v592
        %v699 = vpack.c.b16 %v595, %v594
        %v700 = vpack.c.b16 %v597, %v596
        %v701 = vpack.c.b16 %v599, %v598
        %v702 = vpack.c.b16 %v601, %v600
        %v703 = vpack.c.b16 %v603, %v602
        %v704 = vpack.c.b16 %v605, %v604
        %v705 = vpack.c.b16 %v607, %v606
        %v706 = vpack.c.b16 %v609, %v608
        %v707 = vpack.c.b16 %v611, %v610
        %v708 = vpack.c.b16 %v613, %v612
        %v709 = vpack.c.b16 %v615, %v614
        %v710 = vpack.c.b16 %v617, %v616
        %v711 = vpack.c.b16 %v619, %v618
        %v712 = vpack.c.b16 %v621, %v620
        %v713 = vpack.c.b16 %v623, %v622
        %v714 = vpack.c.b16 %v625, %v624
        %v715 = vpack.c.b16 %v627, %v626
        %v716 = vpack.c.b16 %v629, %v628
        %v717 = vpack.c.b16 %v631, %v630
        %v718 = vpack.c.b16 %v633, %v632
        %v719 = vpack.c.b16 %v635, %v634
        %v720 = vpack.c.b16 %v637, %v636
        %v721 = vpack.c.b16 %v639, %v638
        %v722 = vpack.c.b16 %v641, %v640
        %v723 = vpack.c.b16 %v643, %v642
        %v724 = vpack.c.b16 %v645, %v644
        %v725 = vpack.c.b16 %v647, %v646
        %v726 = vpack.c.b16 %v649, %v648
        %v727 = vpack.c.b16 %v651, %v650
        %v728 = vpack.c.b16 %v653, %v652
        %v729 = vpack.c.b16 %v655, %v654
        %v730 = vpack.c.b16 %v657, %v656
        %v731 = vpack.c.b16 %v659, %v658
        %v732 = vpack.c.b16 %v661, %v660
        %v733 = vpack.c.b16 %v663, %v662
        %v734 = vpack.c.b16 %v665, %v664
        %v735 = vpack.c.b16 %v667, %v666
        %v736 = vpack.c.b16 %v669, %v668
        %v737 = vpack.c.b16 %v671, %v670
        %v738 = vpack.c.b16 %v673, %v672
        %v739 = vpack.c.b16 %v675, %v674
        %804 = vmatprep.subr.bf16.mxu0 0
        %805 = vmatpush1.bf16.msra.mxu0 %v683
        %806 = vmatprep.subr.bf16.mxu0 0
        %807 = vmatpush1.bf16.msra.mxu0 %v682
        %808 = vmatprep.subr.bf16.mxu0 0
        %809 = vmatpush1.bf16.msra.mxu0 %v681
        %810 = vmatprep.subr.bf16.mxu0 0
        %811 = vmatpush1.bf16.msra.mxu0 %v680
        %812 = vmatprep.subr.bf16.mxu0 0
        %813 = vmatpush1.bf16.msra.mxu0 %v679
        %814 = vmatprep.subr.bf16.mxu0 0
        %815 = vmatpush1.bf16.msra.mxu0 %v678
        %816 = vmatprep.subr.bf16.mxu0 0
        %817 = vmatpush1.bf16.msra.mxu0 %v677
        %818 = vmatprep.subr.bf16.mxu0 0
        %819 = vmatpush1.bf16.msra.mxu0 %v676
        %820 = vmatprep.subr.bf16.mxu0 0
        %821 = vmatpush2.bf16.msra.mxu0 %v691
        %822 = vmatprep.subr.bf16.mxu0 0
        %823 = vmatpush2.bf16.msra.mxu0 %v690
        %824 = vmatprep.subr.bf16.mxu0 0
        %825 = vmatpush2.bf16.msra.mxu0 %v689
        %826 = vmatprep.subr.bf16.mxu0 0
        %827 = vmatpush2.bf16.msra.mxu0 %v688
        %828 = vmatprep.subr.bf16.mxu0 0
        %829 = vmatpush2.bf16.msra.mxu0 %v687
        %830 = vmatprep.subr.bf16.mxu0 0
        %831 = vmatpush2.bf16.msra.mxu0 %v686
        %832 = vmatprep.subr.bf16.mxu0 0
        %833 = vmatpush2.bf16.msra.mxu0 %v685
        %834 = vmatprep.subr.bf16.mxu0 0
        %835 = vmatpush2.bf16.msra.mxu0 %v684
        %836 = vmatprep.mubr.bf16.mxu0 %v405
        %837 = vmatmul.mubr.bf16.gmra.mxu0 %v404
        %v838 = vpop.f32.mrf.mxu0
        %v839 = vadd.f32 %v378, %v838
        %v840 = vpop.f32.mrf.mxu0
        %v841 = vpop.f32.mrf.mxu0
        %v842 = vadd.f32 %v379, %v841
        %v843 = vpop.f32.mrf.mxu0
        %844 = vdwg.mxu0
        %845 = vmatprep.subr.bf16.mxu0 0
        %846 = vmatpush1.bf16.msra.mxu0 %v699
        %847 = vmatprep.subr.bf16.mxu0 0
        %848 = vmatpush1.bf16.msra.mxu0 %v698
        %849 = vmatprep.subr.bf16.mxu0 0
        %850 = vmatpush1.bf16.msra.mxu0 %v697
        %851 = vmatprep.subr.bf16.mxu0 0
        %852 = vmatpush1.bf16.msra.mxu0 %v696
        %853 = vmatprep.subr.bf16.mxu0 0
        %854 = vmatpush1.bf16.msra.mxu0 %v695
        %855 = vmatprep.subr.bf16.mxu0 0
        %856 = vmatpush1.bf16.msra.mxu0 %v694
        %857 = vmatprep.subr.bf16.mxu0 0
        %858 = vmatpush1.bf16.msra.mxu0 %v693
        %859 = vmatprep.subr.bf16.mxu0 0
        %860 = vmatpush1.bf16.msra.mxu0 %v692
        %861 = vmatprep.subr.bf16.mxu0 0
        %862 = vmatpush2.bf16.msra.mxu0 %v707
        %863 = vmatprep.subr.bf16.mxu0 0
        %864 = vmatpush2.bf16.msra.mxu0 %v706
        %865 = vmatprep.subr.bf16.mxu0 0
        %866 = vmatpush2.bf16.msra.mxu0 %v705
        %867 = vmatprep.subr.bf16.mxu0 0
        %868 = vmatpush2.bf16.msra.mxu0 %v704
        %869 = vmatprep.subr.bf16.mxu0 0
        %870 = vmatpush2.bf16.msra.mxu0 %v703
        %871 = vmatprep.subr.bf16.mxu0 0
        %872 = vmatpush2.bf16.msra.mxu0 %v702
        %873 = vmatprep.subr.bf16.mxu0 0
        %874 = vmatpush2.bf16.msra.mxu0 %v701
        %875 = vmatprep.subr.bf16.mxu0 0
        %876 = vmatpush2.bf16.msra.mxu0 %v700
        %877 = vmatprep.mubr.bf16.mxu0 %v407
        %878 = vmatmul.mubr.bf16.gmra.mxu0 %v406
        %v879 = vpop.f32.mrf.mxu0
        %v880 = vadd.f32 %v839, %v879
        %v881 = vpop.f32.mrf.mxu0
        %v882 = vpop.f32.mrf.mxu0
        %v883 = vadd.f32 %v842, %v882
        %v884 = vpop.f32.mrf.mxu0
        %885 = vdwg.mxu0
        %886 = vmatprep.subr.bf16.mxu0 0
        %887 = vmatpush1.bf16.msra.mxu0 %v715
        %888 = vmatprep.subr.bf16.mxu0 0
        %889 = vmatpush1.bf16.msra.mxu0 %v714
        %890 = vmatprep.subr.bf16.mxu0 0
        %891 = vmatpush1.bf16.msra.mxu0 %v713
        %892 = vmatprep.subr.bf16.mxu0 0
        %893 = vmatpush1.bf16.msra.mxu0 %v712
        %894 = vmatprep.subr.bf16.mxu0 0
        %895 = vmatpush1.bf16.msra.mxu0 %v711
        %896 = vmatprep.subr.bf16.mxu0 0
        %897 = vmatpush1.bf16.msra.mxu0 %v710
        %898 = vmatprep.subr.bf16.mxu0 0
        %899 = vmatpush1.bf16.msra.mxu0 %v709
        %900 = vmatprep.subr.bf16.mxu0 0
        %901 = vmatpush1.bf16.msra.mxu0 %v708
        %902 = vmatprep.subr.bf16.mxu0 0
        %903 = vmatpush2.bf16.msra.mxu0 %v723
        %904 = vmatprep.subr.bf16.mxu0 0
        %905 = vmatpush2.bf16.msra.mxu0 %v722
        %906 = vmatprep.subr.bf16.mxu0 0
        %907 = vmatpush2.bf16.msra.mxu0 %v721
        %908 = vmatprep.subr.bf16.mxu0 0
        %909 = vmatpush2.bf16.msra.mxu0 %v720
        %910 = vmatprep.subr.bf16.mxu0 0
        %911 = vmatpush2.bf16.msra.mxu0 %v719
        %912 = vmatprep.subr.bf16.mxu0 0
        %913 = vmatpush2.bf16.msra.mxu0 %v718
        %914 = vmatprep.subr.bf16.mxu0 0
        %915 = vmatpush2.bf16.msra.mxu0 %v717
        %916 = vmatprep.subr.bf16.mxu0 0
        %917 = vmatpush2.bf16.msra.mxu0 %v716
        %918 = vmatprep.mubr.bf16.mxu0 %v409
        %919 = vmatmul.mubr.bf16.gmra.mxu0 %v408
        %v920 = vpop.f32.mrf.mxu0
        %v921 = vadd.f32 %v880, %v920
        %v922 = vpop.f32.mrf.mxu0
        %v923 = vpop.f32.mrf.mxu0
        %v924 = vadd.f32 %v883, %v923
        %v925 = vpop.f32.mrf.mxu0
        %926 = vdwg.mxu0
        %927 = vmatprep.subr.bf16.mxu0 0
        %928 = vmatpush1.bf16.msra.mxu0 %v731
        %929 = vmatprep.subr.bf16.mxu0 0
        %930 = vmatpush1.bf16.msra.mxu0 %v730
        %931 = vmatprep.subr.bf16.mxu0 0
        %932 = vmatpush1.bf16.msra.mxu0 %v729
        %933 = vmatprep.subr.bf16.mxu0 0
        %934 = vmatpush1.bf16.msra.mxu0 %v728
        %935 = vmatprep.subr.bf16.mxu0 0
        %936 = vmatpush1.bf16.msra.mxu0 %v727
        %937 = vmatprep.subr.bf16.mxu0 0
        %938 = vmatpush1.bf16.msra.mxu0 %v726
        %939 = vmatprep.subr.bf16.mxu0 0
        %940 = vmatpush1.bf16.msra.mxu0 %v725
        %941 = vmatprep.subr.bf16.mxu0 0
        %942 = vmatpush1.bf16.msra.mxu0 %v724
        %943 = vmatprep.subr.bf16.mxu0 0
        %944 = vmatpush2.bf16.msra.mxu0 %v739
        %945 = vmatprep.subr.bf16.mxu0 0
        %946 = vmatpush2.bf16.msra.mxu0 %v738
        %947 = vmatprep.subr.bf16.mxu0 0
        %948 = vmatpush2.bf16.msra.mxu0 %v737
        %949 = vmatprep.subr.bf16.mxu0 0
        %950 = vmatpush2.bf16.msra.mxu0 %v736
        %951 = vmatprep.subr.bf16.mxu0 0
        %952 = vmatpush2.bf16.msra.mxu0 %v735
        %953 = vmatprep.subr.bf16.mxu0 0
        %954 = vmatpush2.bf16.msra.mxu0 %v734
        %955 = vmatprep.subr.bf16.mxu0 0
        %956 = vmatpush2.bf16.msra.mxu0 %v733
        %957 = vmatprep.subr.bf16.mxu0 0
        %958 = vmatpush2.bf16.msra.mxu0 %v732
        %959 = vmatprep.mubr.bf16.mxu0 %v411
        %960 = vmatmul.mubr.bf16.gmra.mxu0 %v410
        %v961 = vpop.f32.mrf.mxu0
        %v962 = vadd.f32 %v921, %v961
        %v963 = vpop.f32.mrf.mxu0
        %v964 = vpop.f32.mrf.mxu0
        %v965 = vadd.f32 %v924, %v964
        %v966 = vpop.f32.mrf.mxu0
        %967 = vdwg.mxu0
        %968 = vst [vmem:[%s236] sm:$0xff] %v962
        %969 = vst [vmem:[%s236 + $0x8] sm:$0xff] %v965
        %s970 = sand.u32 %s113, 1
        %s971 = scalar_lea.sflag [#allocation4], %s970
        %s972 = sand.u32 %s113, 1
        %s973 = smul.addr %s972, 16
        %s974 = scalar_lea.vmem [#allocation8], %s973
        // Predicated region
        $region45: #{tpu_custom_call.1} parent=31 // pred_check
          %p975 = pneg %p123
        $region46: #{tpu_custom_call.1} parent=31 // pred_check_branch
          %977 = sbr.rel (%p975) target = $region48
        $region47: #{tpu_custom_call.1} parent=31 // pred_region
          %s978 = smul.u32 2, %s26
          %s980 = ssub.s32 256, 256
          %981 = vsyncadd %s971, %s980
          %s982 = smul.addr %s25, 2
          %s983 = sadd.s32 %s978, %s982
          %s984 = smul.addr %s983, 128
          %s985 = scalar_lea.hbm %s3, %s984
          %s986 = sshll.u32 %s974, 4
          %s987 = int_to_ptr.vmem [resolvable:$true] %s986
          %992 = dma.vmem_to_hbm [thread:$0]  %s987, 256, %s985, %s971, 128, 128, 8
        $region48: #{tpu_custom_call.1} parent=31 // pred_fallthru
          _
      $region32: #{tpu_custom_call.1} parent=5 // pred_fallthru
        _
      %p993 = scmp.le.s32.totalorder 2, %s16
      // Predicated region
      $region49: #{tpu_custom_call.1} parent=5 // pred_check
        %p994 = pneg %p993
      $region50: #{tpu_custom_call.1} parent=5 // pred_check_branch
        %996 = sbr.rel (%p994) target = $region52
      $region51: #{tpu_custom_call.1} parent=5 // pred_region
        %s997 = ssub.s32 %s16, 2
        // Predicated region
        $region53: #{tpu_custom_call.1} parent=51 // pred_check
          %p998 = pneg %p129
        $region54: #{tpu_custom_call.1} parent=51 // pred_check_branch
          %1000 = sbr.rel (%p998) target = $region56
        $region55: #{tpu_custom_call.1} parent=51 // pred_region
          %s1001 = sand.u32 %s114, 1
          %s1002 = scalar_lea.sflag [#allocation4], %s1001
          %s1003 = sand.u32 %s114, 1
          %s1004 = smul.addr %s1003, 16
          %s1005 = scalar_lea.vmem [#allocation8], %s1004
          %1006 = dma.done %s1002, 256
        $region56: #{tpu_custom_call.1} parent=51 // pred_fallthru
          _
      $region52: #{tpu_custom_call.1} parent=5 // pred_fallthru
        _
    $region6: #{tpu_custom_call.1} parent=1 // loop_footer
      %s20 = sadd.s32 1, %s16
    $region7: #{tpu_custom_call.1} parent=1 // loop_footer_branch
      %15 = sbr.rel target = $region3
    $region8: #{tpu_custom_call.1} parent=1 // loop_exit
      _
    %1007 = vsyncpa [#allocation3], 1
    %s1008 = scalar_lea.sflag [#allocation3], 1
    %1009 = vsyncpa %s1008, 1
    %1010 = vsyncpa [#allocation6], 1
    %1011 = vsyncpa [#allocation4], 1
    %s1012 = scalar_lea.sflag [#allocation4], 1
    %1013 = vsyncpa %s1012, 1

</llo_original>
